<compile_context>
chip_gen: v7x
topology: tpu7x:2x2x1
jax: 0.10.0
libtpu: 0.0.40
codegen_flags: <defaults>
</compile_context>

<pallas_src>
import functools

import jax
import jax.numpy as jnp
from jax.experimental import pallas as pl
from jax.experimental.pallas import tpu as pltpu


def _nll_partial_sum_kernel(lp_ref, lab_ref, out_ref, *, num_classes):
    """One grid step: partial sum of logp[row, label[row]] over this row tile.

    lp_ref : (TILE_R, W) logits, W = G*C lane-packed (G = 128//C rows per packed
             row) or W = C in the unpacked fallback.
    lab_ref: (TILE_R, G) int32 labels (G = 1 in the fallback).
    out_ref: (1, 8, 128) f32 lane-dense partial-sum block.
    """
    lp = lp_ref[...].astype(jnp.float32)            # upcast in-register (bf16 ok)
    lab = lab_ref[...]                              # int32
    t, w = lp.shape
    g = lab.shape[1]

    lane = jax.lax.broadcasted_iota(jnp.int32, (t, w), 1)

    if g == 1:
        # Unpacked fallback: classes sit directly on the lane axis.
        mask = lane == lab                          # (T,1) broadcasts over lanes
    else:
        # Packed layout: lane l holds (row_in_group = l // C, class = l % C).
        # Target lane for sub-row j is j*C + label.  Expand (T, G) targets to
        # (T, W) with a tiny exact-integer matmul (index plumbing only; the
        # logits gather itself never touches the MXU).
        grp = jax.lax.broadcasted_iota(jnp.int32, (t, g), 1)
        tgt = (lab + num_classes * grp).astype(jnp.float32)          # (T, G)
        er = jax.lax.broadcasted_iota(jnp.int32, (g, w), 0)
        el = jax.lax.broadcasted_iota(jnp.int32, (g, w), 1)
        expand = ((el >= er * num_classes)
                  & (el < (er + 1) * num_classes)).astype(jnp.float32)  # (G, W)
        tgt_lane = jnp.dot(tgt, expand, preferred_element_type=jnp.float32)
        mask = tgt_lane == lane.astype(jnp.float32)

    # Single fused select + reduce (no separate one-hot cast / multiply).
    partial = jnp.sum(jnp.where(mask, lp, 0.0))
    out_ref[...] = jnp.broadcast_to(partial, out_ref.shape)


def _nll_mean_loss(logp, labels, *, max_block_rows=1024):
    """mean_i( -logp[i, labels[i]] ) via a gridded Pallas partial-sum kernel.

    max_block_rows = max packed rows (of 128 lanes) per grid block; must be a
    multiple of 8.
    """
    n, c = logp.shape
    labels = labels.reshape(-1).astype(jnp.int32)

    if c <= 128 and 128 % c == 0:
        g = 128 // c                     # original rows per packed row
    else:
        g = 1                            # lane-sparse fallback
    w = g * c

    pr = -(-n // g)                                       # packed rows needed
    tile_r = min(max_block_rows, -(-pr // 8) * 8)         # multiple of 8
    tile_r = max(8, (tile_r // 8) * 8)
    num_blocks = -(-pr // tile_r)
    pr_pad = num_blocks * tile_r
    n_pad = pr_pad * g

    if n_pad != n:
        # Zero-padded rows contribute exactly 0 to the sum (0 * anything).
        logp = jnp.pad(logp, ((0, n_pad - n), (0, 0)))
        labels = jnp.pad(labels, ((0, n_pad - n),))

    lp_packed = logp.reshape(pr_pad, w)          # contiguous reshape (no copy)
    lab_packed = labels.reshape(pr_pad, g)

    in_bytes = tile_r * (w * jnp.dtype(logp.dtype).itemsize + g * 4)
    vmem_limit = int(max(16 << 20, 8 * in_bytes))

    kernel = functools.partial(_nll_partial_sum_kernel, num_classes=c)
    partials = pl.pallas_call(
        kernel,
        out_shape=jax.ShapeDtypeStruct((num_blocks, 8, 128), jnp.float32),
        grid=(num_blocks,),
        in_specs=[
            pl.BlockSpec((tile_r, w), lambda i: (i, 0)),
            pl.BlockSpec((tile_r, g), lambda i: (i, 0)),
        ],
        out_specs=pl.BlockSpec((1, 8, 128), lambda i: (i, 0, 0)),
        compiler_params=pltpu.CompilerParams(
            dimension_semantics=("parallel",),
            vmem_limit_bytes=vmem_limit,
        ),
    )(lp_packed, lab_packed)

    # Tiny final reduction / mean in the wrapper (per-block partials are
    # independent, so the grid can shard across cores).
    return -jnp.sum(partials[:, 0, 0]) / jnp.float32(n)


def multitask_loss(node_logits, node_labels, graph_logits, graph_labels,
                   node_loss_weight: float = 1.0,
                   graph_loss_weight: float = 1.0,
                   max_block_rows: int = 1024):
    """Pallas implementation of MultiTaskLoss.forward (returns f32 scalar)."""
    node_loss = _nll_mean_loss(node_logits, node_labels,
                               max_block_rows=max_block_rows)
    graph_loss = _nll_mean_loss(graph_logits, graph_labels,
                                max_block_rows=max_block_rows)
    return (jnp.float32(node_loss_weight) * node_loss
            + jnp.float32(graph_loss_weight) * graph_loss)


def _reference(node_logits, node_labels, graph_logits, graph_labels, nw, gw):
    node_loss = -jnp.mean(jnp.take_along_axis(
        node_logits, node_labels[:, None], axis=1))
    graph_loss = -jnp.mean(jnp.take_along_axis(
        graph_logits, graph_labels[:, None], axis=1))
    return nw * node_loss + gw * graph_loss


if __name__ == "__main__":
    key = jax.random.PRNGKey(0)
    k1, k2, k3, k4, k5, k6 = jax.random.split(key, 6)

    N, C_NODE = 16, 8      # node classification: 16 nodes, 8 classes
    G, C_GRAPH = 4, 8      # graph classification: 4 graphs, 8 classes

    # log-probabilities (as produced by log_softmax upstream)
    node_logits = jax.nn.log_softmax(
        jax.random.normal(k1, (N, C_NODE), dtype=jnp.float32), axis=-1)
    graph_logits = jax.nn.log_softmax(
        jax.random.normal(k2, (G, C_GRAPH), dtype=jnp.float32), axis=-1)
    node_labels = jax.random.randint(k3, (N,), 0, C_NODE, dtype=jnp.int32)
    graph_labels = jax.random.randint(k4, (G,), 0, C_GRAPH, dtype=jnp.int32)

    node_w, graph_w = 1.0, 1.0

    out = multitask_loss(node_logits, node_labels, graph_logits, graph_labels,
                         node_loss_weight=node_w, graph_loss_weight=graph_w)
    out = jax.block_until_ready(out)

    ref = _reference(node_logits, node_labels, graph_logits, graph_labels,
                     node_w, graph_w)
    assert jnp.allclose(out, ref, atol=1e-5, rtol=1e-5), (out, ref)

    # Second check: force a multi-block grid (+ row padding) with a tiny tile,
    # exercising the "parallel" grid axis and the per-block partial sums.
    N2 = 300
    lp2 = jax.nn.log_softmax(
        jax.random.normal(k5, (N2, C_NODE), dtype=jnp.float32), axis=-1)
    lab2 = jax.random.randint(k6, (N2,), 0, C_NODE, dtype=jnp.int32)
    got2 = jax.block_until_ready(
        _nll_mean_loss(lp2, lab2, max_block_rows=8))
    ref2 = -jnp.mean(jnp.take_along_axis(lp2, lab2[:, None], axis=1))
    assert jnp.allclose(got2, ref2, atol=1e-5, rtol=1e-5), (got2, ref2)

    print("KERNEL_OK")
</pallas_src>

<mosaic_0001>
module attributes {stable_mosaic.version = 11 : i64} {
  func.func @_nll_partial_sum_kernel(%arg0: i32, %arg1: memref<8x128xf32, #tpu.memory_space<vmem>>, %arg2: memref<8x16xi32, #tpu.memory_space<vmem>>, %arg3: memref<1x8x128xf32, #tpu.memory_space<vmem>>) attributes {dimension_semantics = [#tpu.dimension_semantics<parallel>], iteration_bounds = array<i64: 1>, scalar_prefetch = 0 : i64, scratch_operands = 0 : i64, tpu.core_type = #tpu.core_type<tc>, window_params = [{transform_indices = @transform_0, window_bounds = array<i64: 8, 128>}, {transform_indices = @transform_1, window_bounds = array<i64: 8, 16>}, {transform_indices = @transform_2, window_bounds = array<i64: 1, 8, 128>}]} {
    %c0 = arith.constant 0 : index
    %c0_0 = arith.constant 0 : index
    %0 = vector.load %arg1[%c0, %c0_0] : memref<8x128xf32, #tpu.memory_space<vmem>>, vector<8x128xf32>
    %c0_1 = arith.constant 0 : index
    %c0_2 = arith.constant 0 : index
    %1 = vector.load %arg2[%c0_1, %c0_2] : memref<8x16xi32, #tpu.memory_space<vmem>>, vector<8x16xi32>
    %2 = tpu.iota {dimensions = array<i32: 1>} : vector<8x128xi32>
    %3 = tpu.iota {dimensions = array<i32: 1>} : vector<8x16xi32>
    %c8_i32 = arith.constant 8 : i32
    %4 = vector.broadcast %c8_i32 : i32 to vector<8x16xi32>
    %5 = arith.muli %4, %3 : vector<8x16xi32>
    %6 = arith.addi %1, %5 : vector<8x16xi32>
    %7 = arith.sitofp %6 : vector<8x16xi32> to vector<8x16xf32>
    %8 = tpu.iota {dimensions = array<i32: 0>} : vector<16x128xi32>
    %9 = tpu.iota {dimensions = array<i32: 1>} : vector<16x128xi32>
    %c8_i32_3 = arith.constant 8 : i32
    %10 = vector.broadcast %c8_i32_3 : i32 to vector<16x128xi32>
    %11 = arith.muli %8, %10 : vector<16x128xi32>
    %12 = arith.cmpi sge, %9, %11 : vector<16x128xi32>
    %c1_i32 = arith.constant 1 : i32
    %13 = vector.broadcast %c1_i32 : i32 to vector<16x128xi32>
    %14 = arith.addi %8, %13 : vector<16x128xi32>
    %c8_i32_4 = arith.constant 8 : i32
    %15 = vector.broadcast %c8_i32_4 : i32 to vector<16x128xi32>
    %16 = arith.muli %14, %15 : vector<16x128xi32>
    %17 = arith.cmpi slt, %9, %16 : vector<16x128xi32>
    %18 = arith.andi %12, %17 : vector<16x128xi1>
    %19 = arith.extui %18 : vector<16x128xi1> to vector<16x128xi32>
    %20 = arith.sitofp %19 : vector<16x128xi32> to vector<16x128xf32>
    %cst = arith.constant dense<0.000000e+00> : vector<8x128xf32>
    %21 = tpu.matmul %7, %20, %cst {dimension_numbers = #tpu.dot_dimension_numbers<[1], [0], [0], [1], [0, 0, 1, 1], [], []>} : vector<8x16xf32>, vector<16x128xf32>, vector<8x128xf32> -> vector<8x128xf32>
    %22 = arith.sitofp %2 : vector<8x128xi32> to vector<8x128xf32>
    %23 = arith.cmpf oeq, %21, %22 : vector<8x128xf32>
    %cst_5 = arith.constant 0.000000e+00 : f32
    %24 = vector.broadcast %cst_5 : f32 to vector<8x128xf32>
    %25 = arith.select %23, %0, %24 : vector<8x128xi1>, vector<8x128xf32>
    %26 = vector.shape_cast %25 : vector<8x128xf32> to vector<1x8x128xf32>
    %cst_6 = arith.constant dense<0.000000e+00> : vector<1xf32>
    %27 = vector.multi_reduction <add>, %26, %cst_6 [1, 2] : vector<1x8x128xf32> to vector<1xf32>
    %28 = vector.shape_cast %27 : vector<1xf32> to vector<1x1x1xf32>
    %29 = vector.extract %28[0, 0, 0] : f32 from vector<1x1x1xf32>
    %30 = vector.broadcast %29 : f32 to vector<1x8x128xf32>
    %c0_7 = arith.constant 0 : index
    %c0_8 = arith.constant 0 : index
    %c0_9 = arith.constant 0 : index
    %31 = vector.load %arg3[%c0_7, %c0_8, %c0_9] : memref<1x8x128xf32, #tpu.memory_space<vmem>>, vector<1x8x128xf32>
    tpu.vector_store %arg3[%c0_7, %c0_8, %c0_9], %30 {strides = array<i32>} : memref<1x8x128xf32, #tpu.memory_space<vmem>>, vector<1x8x128xf32>,
    return
  }
  func.func @transform_0(%arg0: i32) -> (i32, i32) {
    %c0_i32 = arith.constant 0 : i32
    %c0_i32_0 = arith.constant 0 : i32
    return %arg0, %c0_i32 : i32, i32
  }
  func.func @transform_1(%arg0: i32) -> (i32, i32) {
    %c0_i32 = arith.constant 0 : i32
    %c0_i32_0 = arith.constant 0 : i32
    return %arg0, %c0_i32 : i32, i32
  }
  func.func @transform_2(%arg0: i32) -> (i32, i32, i32) {
    %c0_i32 = arith.constant 0 : i32
    %c0_i32_0 = arith.constant 0 : i32
    %c0_i32_1 = arith.constant 0 : i32
    return %arg0, %c0_i32, %c0_i32_0 : i32, i32, i32
  }
}

</mosaic_0001>

<llo_original>
// kernel: tpu_custom_call.1
$region0: #{tpu_custom_call.1}
  #allocation0 [shape = 'u32[]', space=smem, size = 0x4, offset = 0x4, fixed_abs, tag = 'smem constant byte address 0x4 - core index']
  #allocation1 [shape = 'u32[144,128]{1,0:T(1,128)}', space=vmem, size = 0x12000, scoped, tag = 'internal scratch']
  %s0 = inlined_call_operand.hbm [shape: f32[8,128], index: 0, kind: input, shape index: {}]
  %s1 = inlined_call_operand.hbm [shape: s32[8,16], index: 1, kind: input, shape index: {}]
  %s2 = inlined_call_operand.hbm [shape: f32[1,8,128], index: 2, kind: output, shape index: {}]
  %s3 = sld [smem:[#allocation0]]
  $region26: #{tpu_custom_call.1} parent=0
    _
  %s5 = ssub.s32 1, %s3
  %s6 = scalar_select 0, %s5, %s3
  $region1: #{tpu_custom_call.1} parent=0
    #allocation2 [shape = 'u8[4096]{0}', space=vmem, size = 0x1000, scoped, tag = 'input window, operand 0, single buffered']
    #allocation3 [shape = 's32[1]{0}', space=sflag, size = 0x4, scoped, tag = 'scoped memory for tpu_custom_call.1']
    #allocation4 [shape = 's32[1]{0}', space=sflag, size = 0x4, scoped, tag = 'scoped memory for tpu_custom_call.1']
    #allocation5 [shape = 'u8[4096]{0}', space=vmem, size = 0x1000, scoped, tag = 'input window, operand 1, single buffered']
    #allocation6 [shape = 's32[1]{0}', space=sflag, size = 0x4, scoped, tag = 'scoped memory for tpu_custom_call.1']
    #allocation7 [shape = 'u8[4096]{0}', space=vmem, size = 0x1000, scoped, tag = 'output window, operand 0, single buffered']
    %7 = vsyncpa [#allocation3], 0
    %8 = vsyncpa [#allocation6], 0
    %9 = vsyncpa [#allocation4], 0
    // Predicated region
    $region2: #{tpu_custom_call.1} parent=1 // pred_check
      _
    $region3: #{tpu_custom_call.1} parent=1 // pred_check_branch
      %11 = sbr.rel (0) target = $region5
    $region4: #{tpu_custom_call.1} parent=1 // pred_region
      %s13 = ssub.s32 128, 128
      %14 = vsyncadd [#allocation3], %s13
      %s16 = sshll.u32 [#allocation2], 4
      %s17 = int_to_ptr.vmem [resolvable:$true] %s16
      %19 = dma.hbm_to_vmem [thread:$0]  %s0, 128, %s17, [#allocation3]
    $region5: #{tpu_custom_call.1} parent=1 // pred_fallthru
      _
    // Predicated region
    $region6: #{tpu_custom_call.1} parent=1 // pred_check
      _
    $region7: #{tpu_custom_call.1} parent=1 // pred_check_branch
      %21 = sbr.rel (0) target = $region9
    $region8: #{tpu_custom_call.1} parent=1 // pred_region
      %s23 = ssub.s32 128, 128
      %24 = vsyncadd [#allocation6], %s23
      %s26 = sshll.u32 [#allocation5], 4
      %s27 = int_to_ptr.vmem [resolvable:$true] %s26
      %29 = dma.hbm_to_vmem [thread:$0]  %s1, 128, %s27, [#allocation6]
    $region9: #{tpu_custom_call.1} parent=1 // pred_fallthru
      _
    // Predicated region
    $region10: #{tpu_custom_call.1} parent=1 // pred_check
      _
    $region11: #{tpu_custom_call.1} parent=1 // pred_check_branch
      %31 = sbr.rel (0) target = $region13
    $region12: #{tpu_custom_call.1} parent=1 // pred_region
      %32 = dma.done [#allocation3], 128
    $region13: #{tpu_custom_call.1} parent=1 // pred_fallthru
      _
    // Predicated region
    $region14: #{tpu_custom_call.1} parent=1 // pred_check
      _
    $region15: #{tpu_custom_call.1} parent=1 // pred_check_branch
      %34 = sbr.rel (0) target = $region17
    $region16: #{tpu_custom_call.1} parent=1 // pred_region
      %35 = dma.done [#allocation6], 128
    $region17: #{tpu_custom_call.1} parent=1 // pred_fallthru
      _
    %v36 = vld [vmem:[#allocation2] sm:$0xff]
    %v37 = vld [vmem:[#allocation5] sm:$0xff]
    %v38 = vlaneseq
    %v39 = vand.u32 %v38, 127
    %v40 = vmul.u32 %v39, 8
    %v41 = vadd.s32 %v37, %v40
    %v42 = vcvt.s32.f32 %v41
    %v43 = vlaneseq
    %v44 = vshrl.u32 %v43, 7
    %v45 = vadd.s32 %v44, 8
    %v46 = vmul.u32 %v44, 8
    %v47 = vmul.u32 %v45, 8
    %vm48 = vcmp.ge.s32.totalorder %v39, %v46
    %vm49 = vcmp.ge.s32.totalorder %v39, %v47
    %v50 = vadd.s32 %v44, 1
    %v51 = vadd.s32 %v45, 1
    %v52 = vmul.u32 %v50, 8
    %v53 = vmul.u32 %v51, 8
    %vm54 = vcmp.lt.s32.totalorder %v39, %v52
    %vm55 = vcmp.lt.s32.totalorder %v39, %v53
    %vm56 = vmand %vm48, %vm54
    %vm57 = vmand %vm49, %vm55
    %v58 = vsel %vm56, 1, 0
    %v59 = vsel %vm57, 1, 0
    %v60 = vcvt.s32.f32 %v58
    %v61 = vcvt.s32.f32 %v59
    %vm62 = vcmask 130048
    %v64 = vsel %vm62, %v42, 0
    %66 = vmatprep.subr.mxu0 0.0
    %67 = vmatpush1.msra.mxu0 %v60
    %68 = vmatprep.subr.mxu0 0.0
    %69 = vmatpush1.msra.mxu0 %v61
    %70 = vmatprep.subr.mxu0 0.0
    %71 = vmatpush1.msra.mxu0 0.0
    %72 = vmatprep.subr.mxu0 0.0
    %73 = vmatpush1.msra.mxu0 0.0
    %74 = vmatprep.subr.mxu0 0.0
    %75 = vmatpush1.msra.mxu0 0.0
    %76 = vmatprep.subr.mxu0 0.0
    %77 = vmatpush1.msra.mxu0 0.0
    %78 = vmatprep.subr.mxu0 0.0
    %79 = vmatpush1.msra.mxu0 0.0
    %80 = vmatprep.subr.mxu0 0.0
    %81 = vmatpush1.msra.mxu0 0.0
    %82 = vmatprep.subr.mxu0 0.0
    %83 = vmatpush1.msra.mxu0 0.0
    %84 = vmatprep.subr.mxu0 0.0
    %85 = vmatpush1.msra.mxu0 0.0
    %86 = vmatprep.subr.mxu0 0.0
    %87 = vmatpush1.msra.mxu0 0.0
    %88 = vmatprep.subr.mxu0 0.0
    %89 = vmatpush1.msra.mxu0 0.0
    %90 = vmatprep.subr.mxu0 0.0
    %91 = vmatpush1.msra.mxu0 0.0
    %92 = vmatprep.subr.mxu0 0.0
    %93 = vmatpush1.msra.mxu0 0.0
    %94 = vmatprep.subr.mxu0 0.0
    %95 = vmatpush1.msra.mxu0 0.0
    %96 = vmatprep.subr.mxu0 0.0
    %97 = vmatpush1.msra.mxu0 0.0
    %98 = vmatprep.subr.mxu0 0.0
    %99 = vmatpush1.msra.mxu0 0.0
    %100 = vmatprep.subr.mxu0 0.0
    %101 = vmatpush1.msra.mxu0 0.0
    %102 = vmatprep.subr.mxu0 0.0
    %103 = vmatpush1.msra.mxu0 0.0
    %104 = vmatprep.subr.mxu0 0.0
    %105 = vmatpush1.msra.mxu0 0.0
    %106 = vmatprep.subr.mxu0 0.0
    %107 = vmatpush1.msra.mxu0 0.0
    %108 = vmatprep.subr.mxu0 0.0
    %109 = vmatpush1.msra.mxu0 0.0
    %110 = vmatprep.subr.mxu0 0.0
    %111 = vmatpush1.msra.mxu0 0.0
    %112 = vmatprep.subr.mxu0 0.0
    %113 = vmatpush1.msra.mxu0 0.0
    %114 = vmatprep.subr.mxu0 0.0
    %115 = vmatpush1.msra.mxu0 0.0
    %116 = vmatprep.subr.mxu0 0.0
    %117 = vmatpush1.msra.mxu0 0.0
    %118 = vmatprep.subr.mxu0 0.0
    %119 = vmatpush1.msra.mxu0 0.0
    %120 = vmatprep.subr.mxu0 0.0
    %121 = vmatpush1.msra.mxu0 0.0
    %122 = vmatprep.subr.mxu0 0.0
    %123 = vmatpush1.msra.mxu0 0.0
    %124 = vmatprep.subr.mxu0 0.0
    %125 = vmatpush1.msra.mxu0 0.0
    %126 = vmatprep.subr.mxu0 0.0
    %127 = vmatpush1.msra.mxu0 0.0
    %128 = vmatprep.subr.mxu0 0.0
    %129 = vmatpush1.msra.mxu0 0.0
    %130 = vmatprep.mubr.f32.mxu0 0.0
    %131 = vmatmul.mubr.f32.gmra.mrb[0].mxu0 %v64
    %v132 = vpop.f32.mrb[0].mxu0
    %v133 = vadd.f32 0.0, %v132
    %v134 = vpop.f32.mrb[0].mxu0
    %135 = vdwg.mxu0
    %v136 = vcvt.s32.f32 %v39
    %vm137 = vcmp.eq.f32.partialorder %v133, %v136
    %v138 = vsel %vm137, %v36, 0.0
    %139 = vadd.xlane.f32.xlu0 %v138
    %v140 = vpop.xlane.xlu0 %139
    %v141 = vrot.slane %v140, 4
    %v142 = vadd.f32 %v140, %v141
    %v143 = vrot.slane %v142, 2
    %v144 = vadd.f32 %v142, %v143
    %v145 = vrot.slane %v144, 1
    %v146 = vadd.f32 %v144, %v145
    %s147 = vtos %v146
    %v148 = vstv %s147
    %149 = vst [vmem:[#allocation7] sm:$0xff] %v148
    // Predicated region
    $region18: #{tpu_custom_call.1} parent=1 // pred_check
      _
    $region19: #{tpu_custom_call.1} parent=1 // pred_check_branch
      %151 = sbr.rel (0) target = $region21
    $region20: #{tpu_custom_call.1} parent=1 // pred_region
      %s153 = ssub.s32 128, 128
      %154 = vsyncadd [#allocation4], %s153
      %s156 = sshll.u32 [#allocation7], 4
      %s157 = int_to_ptr.vmem [resolvable:$true] %s156
      %159 = dma.vmem_to_hbm [thread:$0]  %s157, 128, %s2, [#allocation4]
    $region21: #{tpu_custom_call.1} parent=1 // pred_fallthru
      _
    // Predicated region
    $region22: #{tpu_custom_call.1} parent=1 // pred_check
      _
    $region23: #{tpu_custom_call.1} parent=1 // pred_check_branch
      %161 = sbr.rel (0) target = $region25
    $region24: #{tpu_custom_call.1} parent=1 // pred_region
      %162 = dma.done [#allocation4], 128
    $region25: #{tpu_custom_call.1} parent=1 // pred_fallthru
      _
    %163 = vsyncpa [#allocation3], 1
    %164 = vsyncpa [#allocation6], 1
    %165 = vsyncpa [#allocation4], 1

</llo_original>
